<compile_context>
chip_gen: v7x
topology: tpu7x:2x2x1
jax: 0.10.0
libtpu: 0.0.40
codegen_flags: <defaults>
</compile_context>

<pallas_src>
import numpy as np
import jax
import jax.numpy as jnp
from jax.experimental import pallas as pl
from jax.experimental.pallas import tpu as pltpu


# ----------------------------------------------------------------------------
# Parameter construction (mirrors DCT_mat / generate_filter / Filter.__init__)
# ----------------------------------------------------------------------------
def dct_mat(size):
    m = [[(np.sqrt(1.0 / size) if i == 0 else np.sqrt(2.0 / size))
          * np.cos((j + 0.5) * np.pi * i / size)
          for j in range(size)] for i in range(size)]
    return np.asarray(m, dtype=np.float64)


def generate_filter(start, end, size):
    return np.asarray(
        [[0.0 if (i + j) > end or (i + j) < start else 1.0
          for j in range(size)] for i in range(size)],
        dtype=np.float32)


def make_params(window_size, M, key):
    """Returns D (S,S), KD = D (x) D (S^2,S^2), F (M,S,S), F_flat (M,S^2)."""
    S = window_size
    D64 = dct_mat(S)                                          # float64 (S, S)
    D = jnp.asarray(D64, dtype=jnp.float32)                   # (S, S)
    KD = jnp.asarray(np.kron(D64, D64), dtype=jnp.float32)    # (S*S, S*S)
    filts = []
    for i in range(M):
        start = S * 2.0 / M * i
        end = S * 2.0 / M * (i + 1)
        base = generate_filter(start, end, S)                  # (S, S), frozen
        ft_num = float(np.sum(base))                           # scalar, frozen
        key, sub = jax.random.split(key)
        learnable = 0.1 * jax.random.normal(sub, (S, S), dtype=jnp.float32)
        filt = (jnp.asarray(base)
                + (2.0 * jax.nn.sigmoid(learnable) - 1.0)) / ft_num  # norm_sigma + norm
        filts.append(filt)
    F = jnp.stack(filts, axis=0)                               # (M, S, S)
    F_flat = F.reshape(M, S * S)                               # (M, S*S)
    return D, KD, F, F_flat


# ----------------------------------------------------------------------------
# Pallas kernel: Kronecker DCT matmul + log-magnitude + band-filter matmul
# ----------------------------------------------------------------------------
def lfs_kernel(p_ref, kd_ref, f_ref, o_ref):
    # p_ref : (64, T)      flattened SxS patches, patch index on the lane axis
    # kd_ref: (64, 64)     Kronecker DCT matrix (D (x) D), resident in VMEM
    # f_ref : (M_pad, 64)  flattened normalized band filters (zero padded)
    # o_ref : (M_pad, T)   per-band statistics per patch
    x = jnp.dot(kd_ref[...], p_ref[...], preferred_element_type=jnp.float32)
    y = jnp.log10(jnp.abs(x) + 1e-15)
    o_ref[...] = jnp.dot(f_ref[...], y, preferred_element_type=jnp.float32)


# ----------------------------------------------------------------------------
# Glue: grayscale + scale + nn.Unfold(kernel=S, stride=2, padding=4)
# ----------------------------------------------------------------------------
def _gray_unfold(x, S):
    """Returns (patches (N*sa_h*sa_w, S, S), N, sa_h, sa_w) in Unfold order."""
    N, C, H, W = x.shape
    assert C == 3
    xg = 0.299 * x[:, 0] + 0.587 * x[:, 1] + 0.114 * x[:, 2]   # (N, H, W)
    xg = (xg + 1.0) * 122.5
    sa_h = (H - S + 8) // 2 + 1
    sa_w = (W - S + 8) // 2 + 1
    xp = jnp.pad(xg, ((0, 0), (4, 4), (4, 4)))                 # zero pad
    rows = jnp.arange(sa_h)[:, None] * 2 + jnp.arange(S)[None, :]   # (sa_h, S)
    cols = jnp.arange(sa_w)[:, None] * 2 + jnp.arange(S)[None, :]   # (sa_w, S)
    # patches[n, oh, ow, a, b] = xp[n, 2*oh + a, 2*ow + b]
    patches = xp[:, rows[:, None, :, None], cols[None, :, None, :]]
    patches = patches.reshape(N * sa_h * sa_w, S, S).astype(jnp.float32)
    return patches, N, sa_h, sa_w


# ----------------------------------------------------------------------------
# Wrapper: glue + pallas_call + final reshape/transpose
# ----------------------------------------------------------------------------
def lfs_head_forward(x, KD, F_flat, window_size, M, tile=1024):
    S = window_size
    K = S * S
    patches, N, sa_h, sa_w = _gray_unfold(x, S)
    NP = patches.shape[0]

    # Lane-dense layout: (K, NP_pad), patch index on the last (lane) axis.
    NP_pad = pl.cdiv(NP, tile) * tile
    p_t = jnp.pad(patches.reshape(NP, K), ((0, NP_pad - NP), (0, 0))).T

    # Pad the band axis to a sublane multiple so all blocks are aligned.
    M_pad = ((M + 7) // 8) * 8
    f_pad = jnp.pad(F_flat, ((0, M_pad - M), (0, 0)))

    out_flat = pl.pallas_call(
        lfs_kernel,
        out_shape=jax.ShapeDtypeStruct((M_pad, NP_pad), jnp.float32),
        grid=(NP_pad // tile,),
        in_specs=[
            pl.BlockSpec((K, tile), lambda i: (0, i)),     # patches (pipelined)
            pl.BlockSpec((K, K), lambda i: (0, 0)),        # KD (resident)
            pl.BlockSpec((M_pad, K), lambda i: (0, 0)),    # filters (resident)
        ],
        out_specs=pl.BlockSpec((M_pad, tile), lambda i: (0, i)),
        compiler_params=pltpu.CompilerParams(
            dimension_semantics=("parallel",)),
    )(p_t, KD, f_pad)

    # Padded bands / padded patches are sliced off here.
    out = out_flat[:M, :NP].reshape(M, N, sa_h, sa_w)
    return jnp.transpose(out, (1, 0, 2, 3))                 # (N, M, sa_h, sa_w)


# ----------------------------------------------------------------------------
# Pure-JAX reference (original two-step module math) for correctness check.
# ----------------------------------------------------------------------------
def lfs_head_reference(x, D, F, window_size, M):
    S = window_size
    patches, N, sa_h, sa_w = _gray_unfold(x, S)
    x_dct = jnp.einsum('ab,nbc,cd->nad', D, patches, D.T)
    y = jnp.log10(jnp.abs(x_dct) + 1e-15)
    out = jnp.einsum('nab,mab->nm', y, F)
    out = out.reshape(N, sa_h, sa_w, M)
    return jnp.transpose(out, (0, 3, 1, 2))


if __name__ == "__main__":
    key = jax.random.PRNGKey(0)
    window_size = 8
    M = 4
    N = 2
    H = W = 16          # size_after = (16 - 8 + 8)//2 + 1 = 9 (small synthetic)

    k_x, k_p = jax.random.split(key)
    x = jax.random.uniform(k_x, (N, 3, H, W), dtype=jnp.float32,
                           minval=-1.0, maxval=1.0)
    D, KD, F, F_flat = make_params(window_size, M, k_p)

    # Exact float64 sanity check of the Kronecker-DCT reformulation.
    D64 = dct_mat(window_size)
    Pt = np.random.RandomState(0).rand(window_size, window_size)
    np.testing.assert_allclose(
        D64 @ Pt @ D64.T,
        (np.kron(D64, D64) @ Pt.reshape(-1)).reshape(window_size, window_size),
        rtol=1e-10, atol=1e-10)

    out = lfs_head_forward(x, KD, F_flat, window_size, M)
    out = jax.block_until_ready(out)

    size_after = (W - window_size + 8) // 2 + 1
    assert out.shape == (N, M, size_after, size_after), out.shape

    ref = lfs_head_reference(x, D, F, window_size, M)
    # Tolerance note: the kernel accumulates each DCT coefficient in one
    # 64-term Kronecker matmul while the reference uses two 8-term matmuls;
    # log10(|DCT|) amplifies that f32 rounding wherever a coefficient happens
    # to land near zero, so band sums are compared at ~0.5% absolute.
    np.testing.assert_allclose(np.asarray(out), np.asarray(ref),
                               rtol=1e-3, atol=1e-2)
    print("KERNEL_OK")
</pallas_src>

<mosaic_0001>
module attributes {stable_mosaic.version = 11 : i64} {
  func.func @lfs_kernel(%arg0: i32, %arg1: memref<64x1024xf32, #tpu.memory_space<vmem>>, %arg2: memref<64x64xf32, #tpu.memory_space<vmem>>, %arg3: memref<8x64xf32, #tpu.memory_space<vmem>>, %arg4: memref<8x1024xf32, #tpu.memory_space<vmem>>) attributes {dimension_semantics = [#tpu.dimension_semantics<parallel>], iteration_bounds = array<i64: 1>, scalar_prefetch = 0 : i64, scratch_operands = 0 : i64, tpu.core_type = #tpu.core_type<tc>, window_params = [{transform_indices = @transform_0, window_bounds = array<i64: 64, 1024>}, {pipeline_mode = #tpu.pipeline_mode<synchronous>, transform_indices = @transform_1, window_bounds = array<i64: 64, 64>}, {pipeline_mode = #tpu.pipeline_mode<synchronous>, transform_indices = @transform_2, window_bounds = array<i64: 8, 64>}, {transform_indices = @transform_3, window_bounds = array<i64: 8, 1024>}]} {
    %c0 = arith.constant 0 : index
    %c0_0 = arith.constant 0 : index
    %0 = vector.load %arg2[%c0, %c0_0] : memref<64x64xf32, #tpu.memory_space<vmem>>, vector<64x64xf32>
    %c0_1 = arith.constant 0 : index
    %c0_2 = arith.constant 0 : index
    %1 = vector.load %arg1[%c0_1, %c0_2] : memref<64x1024xf32, #tpu.memory_space<vmem>>, vector<64x1024xf32>
    %cst = arith.constant dense<0.000000e+00> : vector<64x1024xf32>
    %2 = tpu.matmul %0, %1, %cst {dimension_numbers = #tpu.dot_dimension_numbers<[1], [0], [0], [1], [0, 0, 1, 1], [], []>} : vector<64x64xf32>, vector<64x1024xf32>, vector<64x1024xf32> -> vector<64x1024xf32>
    %3 = math.absf %2 : vector<64x1024xf32>
    %cst_3 = arith.constant 1.000000e-15 : f32
    %4 = vector.broadcast %cst_3 : f32 to vector<64x1024xf32>
    %5 = arith.addf %3, %4 : vector<64x1024xf32>
    %6 = math.log %5 : vector<64x1024xf32>
    %cst_4 = arith.constant 0.434294492 : f32
    %7 = vector.broadcast %cst_4 : f32 to vector<64x1024xf32>
    %8 = arith.mulf %6, %7 : vector<64x1024xf32>
    %c0_5 = arith.constant 0 : index
    %c0_6 = arith.constant 0 : index
    %9 = vector.load %arg3[%c0_5, %c0_6] : memref<8x64xf32, #tpu.memory_space<vmem>>, vector<8x64xf32>
    %cst_7 = arith.constant dense<0.000000e+00> : vector<8x1024xf32>
    %10 = tpu.matmul %9, %8, %cst_7 {dimension_numbers = #tpu.dot_dimension_numbers<[1], [0], [0], [1], [0, 0, 1, 1], [], []>} : vector<8x64xf32>, vector<64x1024xf32>, vector<8x1024xf32> -> vector<8x1024xf32>
    %c0_8 = arith.constant 0 : index
    %c0_9 = arith.constant 0 : index
    %11 = vector.load %arg4[%c0_8, %c0_9] : memref<8x1024xf32, #tpu.memory_space<vmem>>, vector<8x1024xf32>
    tpu.vector_store %arg4[%c0_8, %c0_9], %10 {strides = array<i32>} : memref<8x1024xf32, #tpu.memory_space<vmem>>, vector<8x1024xf32>,
    return
  }
  func.func @transform_0(%arg0: i32) -> (i32, i32) {
    %c0_i32 = arith.constant 0 : i32
    %c0_i32_0 = arith.constant 0 : i32
    return %c0_i32, %arg0 : i32, i32
  }
  func.func @transform_1(%arg0: i32) -> (i32, i32) {
    %c0_i32 = arith.constant 0 : i32
    %c0_i32_0 = arith.constant 0 : i32
    %c0_i32_1 = arith.constant 0 : i32
    return %c0_i32, %c0_i32_0 : i32, i32
  }
  func.func @transform_2(%arg0: i32) -> (i32, i32) {
    %c0_i32 = arith.constant 0 : i32
    %c0_i32_0 = arith.constant 0 : i32
    %c0_i32_1 = arith.constant 0 : i32
    return %c0_i32, %c0_i32_0 : i32, i32
  }
  func.func @transform_3(%arg0: i32) -> (i32, i32) {
    %c0_i32 = arith.constant 0 : i32
    %c0_i32_0 = arith.constant 0 : i32
    return %c0_i32, %arg0 : i32, i32
  }
}

</mosaic_0001>

<llo_original>
// kernel: tpu_custom_call.1
$region0: #{tpu_custom_call.1}
  #allocation0 [shape = 'u32[]', space=smem, size = 0x4, offset = 0x4, fixed_abs, tag = 'smem constant byte address 0x4 - core index']
  #allocation1 [shape = 'u32[144,128]{1,0:T(1,128)}', space=vmem, size = 0x12000, scoped, tag = 'internal scratch']
  %s0 = inlined_call_operand.hbm [shape: f32[64,1024], index: 0, kind: input, shape index: {}]
  %s1 = inlined_call_operand.hbm [shape: f32[64,64], index: 1, kind: input, shape index: {}]
  %s2 = inlined_call_operand.hbm [shape: f32[8,64], index: 2, kind: input, shape index: {}]
  %s3 = inlined_call_operand.hbm [shape: f32[8,1024], index: 3, kind: output, shape index: {}]
  %s4 = sld [smem:[#allocation0]]
  $region34: #{tpu_custom_call.1} parent=0
    _
  %s6 = ssub.s32 1, %s4
  %s7 = scalar_select 0, %s6, %s4
  $region1: #{tpu_custom_call.1} parent=0
    #allocation2 [shape = 'u8[262144]{0}', space=vmem, size = 0x40000, scoped, tag = 'input window, operand 0, single buffered']
    #allocation3 [shape = 's32[1]{0}', space=sflag, size = 0x4, scoped, tag = 'scoped memory for tpu_custom_call.1']
    #allocation4 [shape = 's32[1]{0}', space=sflag, size = 0x4, scoped, tag = 'scoped memory for tpu_custom_call.1']
    #allocation5 [shape = 'u8[32768]{0}', space=vmem, size = 0x8000, scoped, tag = 'input window, operand 1, single buffered']
    #allocation6 [shape = 's32[1]{0}', space=sflag, size = 0x4, scoped, tag = 'scoped memory for tpu_custom_call.1']
    #allocation7 [shape = 'u8[4096]{0}', space=vmem, size = 0x1000, scoped, tag = 'input window, operand 2, single buffered']
    #allocation8 [shape = 'u8[32768]{0}', space=vmem, size = 0x8000, scoped, tag = 'output window, operand 0, single buffered']
    %8 = vsyncpa [#allocation3], 0
    %9 = vsyncpa [#allocation6], 0
    %10 = vsyncpa [#allocation4], 0
    // Predicated region
    $region2: #{tpu_custom_call.1} parent=1 // pred_check
      _
    $region3: #{tpu_custom_call.1} parent=1 // pred_check_branch
      %12 = sbr.rel (0) target = $region5
    $region4: #{tpu_custom_call.1} parent=1 // pred_region
      %s14 = ssub.s32 8192, 8192
      %15 = vsyncadd [#allocation3], %s14
      %s16 = sshll.u32 [#allocation2], 4
      %s17 = int_to_ptr.vmem [resolvable:$true] %s16
      %22 = dma.hbm_to_vmem [thread:$0]  %s0, 8192, %s17, [#allocation3], 1024, 1024, 64
    $region5: #{tpu_custom_call.1} parent=1 // pred_fallthru
      _
    // Predicated region
    $region6: #{tpu_custom_call.1} parent=1 // pred_check
      _
    $region7: #{tpu_custom_call.1} parent=1 // pred_check_branch
      %24 = sbr.rel (0) target = $region9
    $region8: #{tpu_custom_call.1} parent=1 // pred_region
      %s26 = ssub.s32 1024, 1024
      %27 = vsyncadd [#allocation6], %s26
      %s28 = sshll.u32 [#allocation5], 4
      %s29 = int_to_ptr.vmem [resolvable:$true] %s28
      %34 = dma.hbm_to_vmem [thread:$0]  %s1, 1024, %s29, [#allocation6], 128, 128, 8
    $region9: #{tpu_custom_call.1} parent=1 // pred_fallthru
      _
    // Predicated region
    $region10: #{tpu_custom_call.1} parent=1 // pred_check
      _
    $region11: #{tpu_custom_call.1} parent=1 // pred_check_branch
      %36 = sbr.rel (0) target = $region13
    $region12: #{tpu_custom_call.1} parent=1 // pred_region
      %s38 = ssub.s32 128, 128
      %39 = vsyncadd [#allocation6], %s38
      %s41 = sshll.u32 [#allocation7], 4
      %s42 = int_to_ptr.vmem [resolvable:$true] %s41
      %44 = dma.hbm_to_vmem [thread:$0]  %s2, 128, %s42, [#allocation6]
    $region13: #{tpu_custom_call.1} parent=1 // pred_fallthru
      _
    // Predicated region
    $region14: #{tpu_custom_call.1} parent=1 // pred_check
      _
    $region15: #{tpu_custom_call.1} parent=1 // pred_check_branch
      %46 = sbr.rel (0) target = $region17
    $region16: #{tpu_custom_call.1} parent=1 // pred_region
      %47 = dma.done [#allocation3], 8192
    $region17: #{tpu_custom_call.1} parent=1 // pred_fallthru
      _
    // Predicated region
    $region18: #{tpu_custom_call.1} parent=1 // pred_check
      _
    $region19: #{tpu_custom_call.1} parent=1 // pred_check_branch
      %49 = sbr.rel (0) target = $region21
    $region20: #{tpu_custom_call.1} parent=1 // pred_region
      %50 = dma.done [#allocation6], 1024
    $region21: #{tpu_custom_call.1} parent=1 // pred_fallthru
      _
    // Predicated region
    $region22: #{tpu_custom_call.1} parent=1 // pred_check
      _
    $region23: #{tpu_custom_call.1} parent=1 // pred_check_branch
      %52 = sbr.rel (0) target = $region25
    $region24: #{tpu_custom_call.1} parent=1 // pred_region
      %53 = dma.done [#allocation6], 128
    $region25: #{tpu_custom_call.1} parent=1 // pred_fallthru
      _
    %v54 = vld [vmem:[#allocation5] sm:$0xff]
    %v55 = vld [vmem:[#allocation5 + $0x8] sm:$0xff]
    %v56 = vld [vmem:[#allocation5 + $0x10] sm:$0xff]
    %v57 = vld [vmem:[#allocation5 + $0x18] sm:$0xff]
    %v58 = vld [vmem:[#allocation5 + $0x20] sm:$0xff]
    %v59 = vld [vmem:[#allocation5 + $0x28] sm:$0xff]
    %v60 = vld [vmem:[#allocation5 + $0x30] sm:$0xff]
    %v61 = vld [vmem:[#allocation5 + $0x38] sm:$0xff]
    %v62 = vld [vmem:[#allocation2] sm:$0xff]
    %v63 = vld [vmem:[#allocation2 + $0x8] sm:$0xff]
    %v64 = vld [vmem:[#allocation2 + $0x10] sm:$0xff]
    %v65 = vld [vmem:[#allocation2 + $0x18] sm:$0xff]
    %v66 = vld [vmem:[#allocation2 + $0x20] sm:$0xff]
    %v67 = vld [vmem:[#allocation2 + $0x28] sm:$0xff]
    %v68 = vld [vmem:[#allocation2 + $0x30] sm:$0xff]
    %v69 = vld [vmem:[#allocation2 + $0x38] sm:$0xff]
    %v70 = vld [vmem:[#allocation2 + $0x40] sm:$0xff]
    %v71 = vld [vmem:[#allocation2 + $0x48] sm:$0xff]
    %v72 = vld [vmem:[#allocation2 + $0x50] sm:$0xff]
    %v73 = vld [vmem:[#allocation2 + $0x58] sm:$0xff]
    %v74 = vld [vmem:[#allocation2 + $0x60] sm:$0xff]
    %v75 = vld [vmem:[#allocation2 + $0x68] sm:$0xff]
    %v76 = vld [vmem:[#allocation2 + $0x70] sm:$0xff]
    %v77 = vld [vmem:[#allocation2 + $0x78] sm:$0xff]
    %v78 = vld [vmem:[#allocation2 + $0x80] sm:$0xff]
    %v79 = vld [vmem:[#allocation2 + $0x88] sm:$0xff]
    %v80 = vld [vmem:[#allocation2 + $0x90] sm:$0xff]
    %v81 = vld [vmem:[#allocation2 + $0x98] sm:$0xff]
    %v82 = vld [vmem:[#allocation2 + $0xa0] sm:$0xff]
    %v83 = vld [vmem:[#allocation2 + $0xa8] sm:$0xff]
    %v84 = vld [vmem:[#allocation2 + $0xb0] sm:$0xff]
    %v85 = vld [vmem:[#allocation2 + $0xb8] sm:$0xff]
    %v86 = vld [vmem:[#allocation2 + $0xc0] sm:$0xff]
    %v87 = vld [vmem:[#allocation2 + $0xc8] sm:$0xff]
    %v88 = vld [vmem:[#allocation2 + $0xd0] sm:$0xff]
    %v89 = vld [vmem:[#allocation2 + $0xd8] sm:$0xff]
    %v90 = vld [vmem:[#allocation2 + $0xe0] sm:$0xff]
    %v91 = vld [vmem:[#allocation2 + $0xe8] sm:$0xff]
    %v92 = vld [vmem:[#allocation2 + $0xf0] sm:$0xff]
    %v93 = vld [vmem:[#allocation2 + $0xf8] sm:$0xff]
    %v94 = vld [vmem:[#allocation2 + $0x100] sm:$0xff]
    %v95 = vld [vmem:[#allocation2 + $0x108] sm:$0xff]
    %v96 = vld [vmem:[#allocation2 + $0x110] sm:$0xff]
    %v97 = vld [vmem:[#allocation2 + $0x118] sm:$0xff]
    %v98 = vld [vmem:[#allocation2 + $0x120] sm:$0xff]
    %v99 = vld [vmem:[#allocation2 + $0x128] sm:$0xff]
    %v100 = vld [vmem:[#allocation2 + $0x130] sm:$0xff]
    %v101 = vld [vmem:[#allocation2 + $0x138] sm:$0xff]
    %v102 = vld [vmem:[#allocation2 + $0x140] sm:$0xff]
    %v103 = vld [vmem:[#allocation2 + $0x148] sm:$0xff]
    %v104 = vld [vmem:[#allocation2 + $0x150] sm:$0xff]
    %v105 = vld [vmem:[#allocation2 + $0x158] sm:$0xff]
    %v106 = vld [vmem:[#allocation2 + $0x160] sm:$0xff]
    %v107 = vld [vmem:[#allocation2 + $0x168] sm:$0xff]
    %v108 = vld [vmem:[#allocation2 + $0x170] sm:$0xff]
    %v109 = vld [vmem:[#allocation2 + $0x178] sm:$0xff]
    %v110 = vld [vmem:[#allocation2 + $0x180] sm:$0xff]
    %v111 = vld [vmem:[#allocation2 + $0x188] sm:$0xff]
    %v112 = vld [vmem:[#allocation2 + $0x190] sm:$0xff]
    %v113 = vld [vmem:[#allocation2 + $0x198] sm:$0xff]
    %v114 = vld [vmem:[#allocation2 + $0x1a0] sm:$0xff]
    %v115 = vld [vmem:[#allocation2 + $0x1a8] sm:$0xff]
    %v116 = vld [vmem:[#allocation2 + $0x1b0] sm:$0xff]
    %v117 = vld [vmem:[#allocation2 + $0x1b8] sm:$0xff]
    %v118 = vld [vmem:[#allocation2 + $0x1c0] sm:$0xff]
    %v119 = vld [vmem:[#allocation2 + $0x1c8] sm:$0xff]
    %v120 = vld [vmem:[#allocation2 + $0x1d0] sm:$0xff]
    %v121 = vld [vmem:[#allocation2 + $0x1d8] sm:$0xff]
    %v122 = vld [vmem:[#allocation2 + $0x1e0] sm:$0xff]
    %v123 = vld [vmem:[#allocation2 + $0x1e8] sm:$0xff]
    %v124 = vld [vmem:[#allocation2 + $0x1f0] sm:$0xff]
    %v125 = vld [vmem:[#allocation2 + $0x1f8] sm:$0xff]
    %vm126 = vcmask 523264
    %v128 = vsel %vm126, %v54, 0
    %v131 = vsel %vm126, %v55, 0
    %v134 = vsel %vm126, %v56, 0
    %v137 = vsel %vm126, %v57, 0
    %v140 = vsel %vm126, %v58, 0
    %v143 = vsel %vm126, %v59, 0
    %v146 = vsel %vm126, %v60, 0
    %v149 = vsel %vm126, %v61, 0
    %151 = vmatprep.subr.mxu0 %v63
    %152 = vmatpush1.msra.mxu0 %v62
    %153 = vmatprep.subr.mxu0 %v71
    %154 = vmatpush1.msra.mxu0 %v70
    %155 = vmatprep.subr.mxu0 %v79
    %156 = vmatpush1.msra.mxu0 %v78
    %157 = vmatprep.subr.mxu0 %v87
    %158 = vmatpush1.msra.mxu0 %v86
    %159 = vmatprep.subr.mxu0 %v95
    %160 = vmatpush1.msra.mxu0 %v94
    %161 = vmatprep.subr.mxu0 %v103
    %162 = vmatpush1.msra.mxu0 %v102
    %163 = vmatprep.subr.mxu0 %v111
    %164 = vmatpush1.msra.mxu0 %v110
    %165 = vmatprep.subr.mxu0 %v119
    %166 = vmatpush1.msra.mxu0 %v118
    %167 = vmatprep.subr.mxu0 0.0
    %168 = vmatpush1.msra.mxu0 0.0
    %169 = vmatprep.subr.mxu0 0.0
    %170 = vmatpush1.msra.mxu0 0.0
    %171 = vmatprep.subr.mxu0 0.0
    %172 = vmatpush1.msra.mxu0 0.0
    %173 = vmatprep.subr.mxu0 0.0
    %174 = vmatpush1.msra.mxu0 0.0
    %175 = vmatprep.subr.mxu0 0.0
    %176 = vmatpush1.msra.mxu0 0.0
    %177 = vmatprep.subr.mxu0 0.0
    %178 = vmatpush1.msra.mxu0 0.0
    %179 = vmatprep.subr.mxu0 0.0
    %180 = vmatpush1.msra.mxu0 0.0
    %181 = vmatprep.subr.mxu0 0.0
    %182 = vmatpush1.msra.mxu0 0.0
    %183 = vmatprep.subr.mxu0 0.0
    %184 = vmatpush1.msra.mxu0 0.0
    %185 = vmatprep.subr.mxu0 0.0
    %186 = vmatpush1.msra.mxu0 0.0
    %187 = vmatprep.subr.mxu0 0.0
    %188 = vmatpush1.msra.mxu0 0.0
    %189 = vmatprep.subr.mxu0 0.0
    %190 = vmatpush1.msra.mxu0 0.0
    %191 = vmatprep.subr.mxu0 0.0
    %192 = vmatpush1.msra.mxu0 0.0
    %193 = vmatprep.subr.mxu0 0.0
    %194 = vmatpush1.msra.mxu0 0.0
    %195 = vmatprep.subr.mxu0 0.0
    %196 = vmatpush1.msra.mxu0 0.0
    %197 = vmatprep.subr.mxu0 0.0
    %198 = vmatpush1.msra.mxu0 0.0
    %199 = vmatprep.subr.mxu0 0.0
    %200 = vmatpush1.msra.mxu0 0.0
    %201 = vmatprep.subr.mxu0 0.0
    %202 = vmatpush1.msra.mxu0 0.0
    %203 = vmatprep.subr.mxu0 0.0
    %204 = vmatpush1.msra.mxu0 0.0
    %205 = vmatprep.subr.mxu0 0.0
    %206 = vmatpush1.msra.mxu0 0.0
    %207 = vmatprep.subr.mxu0 0.0
    %208 = vmatpush1.msra.mxu0 0.0
    %209 = vmatprep.subr.mxu0 0.0
    %210 = vmatpush1.msra.mxu0 0.0
    %211 = vmatprep.subr.mxu0 0.0
    %212 = vmatpush1.msra.mxu0 0.0
    %213 = vmatprep.subr.mxu0 0.0
    %214 = vmatpush1.msra.mxu0 0.0
    %215 = vmatprep.mubr.f32.mxu0 0.0
    %216 = vmatmul.mubr.f32.gmra.mrb[0].mxu0 %v128
    %v217 = vpop.f32.mrb[0].mxu0
    %v218 = vadd.f32 0.0, %v217
    %v219 = vpop.f32.mrb[0].mxu0
    %v220 = vadd.f32 0.0, %v219
    %221 = vmatprep.mubr.f32.mxu0 0.0
    %222 = vmatmul.mubr.f32.gmra.mrb[0].mxu0 %v131
    %v223 = vpop.f32.mrb[0].mxu0
    %v224 = vadd.f32 0.0, %v223
    %v225 = vpop.f32.mrb[0].mxu0
    %v226 = vadd.f32 0.0, %v225
    %227 = vmatprep.mubr.f32.mxu0 0.0
    %228 = vmatmul.mubr.f32.gmra.mrb[0].mxu0 %v134
    %v229 = vpop.f32.mrb[0].mxu0
    %v230 = vadd.f32 0.0, %v229
    %v231 = vpop.f32.mrb[0].mxu0
    %v232 = vadd.f32 0.0, %v231
    %233 = vmatprep.mubr.f32.mxu0 0.0
    %234 = vmatmul.mubr.f32.gmra.mrb[0].mxu0 %v137
    %v235 = vpop.f32.mrb[0].mxu0
    %v236 = vadd.f32 0.0, %v235
    %v237 = vpop.f32.mrb[0].mxu0
    %v238 = vadd.f32 0.0, %v237
    %239 = vmatprep.mubr.f32.mxu0 0.0
    %240 = vmatmul.mubr.f32.gmra.mrb[0].mxu0 %v140
    %v241 = vpop.f32.mrb[0].mxu0
    %v242 = vadd.f32 0.0, %v241
    %v243 = vpop.f32.mrb[0].mxu0
    %v244 = vadd.f32 0.0, %v243
    %245 = vmatprep.mubr.f32.mxu0 0.0
    %246 = vmatmul.mubr.f32.gmra.mrb[0].mxu0 %v143
    %v247 = vpop.f32.mrb[0].mxu0
    %v248 = vadd.f32 0.0, %v247
    %v249 = vpop.f32.mrb[0].mxu0
    %v250 = vadd.f32 0.0, %v249
    %251 = vmatprep.mubr.f32.mxu0 0.0
    %252 = vmatmul.mubr.f32.gmra.mrb[0].mxu0 %v146
    %v253 = vpop.f32.mrb[0].mxu0
    %v254 = vadd.f32 0.0, %v253
    %v255 = vpop.f32.mrb[0].mxu0
    %v256 = vadd.f32 0.0, %v255
    %257 = vmatprep.mubr.f32.mxu0 0.0
    %258 = vmatmul.mubr.f32.gmra.mrb[0].mxu0 %v149
    %v259 = vpop.f32.mrb[0].mxu0
    %v260 = vadd.f32 0.0, %v259
    %v261 = vpop.f32.mrb[0].mxu0
    %v262 = vadd.f32 0.0, %v261
    %263 = vdwg.mxu0
    %264 = vmatprep.subr.mxu0 %v65
    %265 = vmatpush1.msra.mxu0 %v64
    %266 = vmatprep.subr.mxu0 %v73
    %267 = vmatpush1.msra.mxu0 %v72
    %268 = vmatprep.subr.mxu0 %v81
    %269 = vmatpush1.msra.mxu0 %v80
    %270 = vmatprep.subr.mxu0 %v89
    %271 = vmatpush1.msra.mxu0 %v88
    %272 = vmatprep.subr.mxu0 %v97
    %273 = vmatpush1.msra.mxu0 %v96
    %274 = vmatprep.subr.mxu0 %v105
    %275 = vmatpush1.msra.mxu0 %v104
    %276 = vmatprep.subr.mxu0 %v113
    %277 = vmatpush1.msra.mxu0 %v112
    %278 = vmatprep.subr.mxu0 %v121
    %279 = vmatpush1.msra.mxu0 %v120
    %280 = vmatprep.subr.mxu0 0.0
    %281 = vmatpush1.msra.mxu0 0.0
    %282 = vmatprep.subr.mxu0 0.0
    %283 = vmatpush1.msra.mxu0 0.0
    %284 = vmatprep.subr.mxu0 0.0
    %285 = vmatpush1.msra.mxu0 0.0
    %286 = vmatprep.subr.mxu0 0.0
    %287 = vmatpush1.msra.mxu0 0.0
    %288 = vmatprep.subr.mxu0 0.0
    %289 = vmatpush1.msra.mxu0 0.0
    %290 = vmatprep.subr.mxu0 0.0
    %291 = vmatpush1.msra.mxu0 0.0
    %292 = vmatprep.subr.mxu0 0.0
    %293 = vmatpush1.msra.mxu0 0.0
    %294 = vmatprep.subr.mxu0 0.0
    %295 = vmatpush1.msra.mxu0 0.0
    %296 = vmatprep.subr.mxu0 0.0
    %297 = vmatpush1.msra.mxu0 0.0
    %298 = vmatprep.subr.mxu0 0.0
    %299 = vmatpush1.msra.mxu0 0.0
    %300 = vmatprep.subr.mxu0 0.0
    %301 = vmatpush1.msra.mxu0 0.0
    %302 = vmatprep.subr.mxu0 0.0
    %303 = vmatpush1.msra.mxu0 0.0
    %304 = vmatprep.subr.mxu0 0.0
    %305 = vmatpush1.msra.mxu0 0.0
    %306 = vmatprep.subr.mxu0 0.0
    %307 = vmatpush1.msra.mxu0 0.0
    %308 = vmatprep.subr.mxu0 0.0
    %309 = vmatpush1.msra.mxu0 0.0
    %310 = vmatprep.subr.mxu0 0.0
    %311 = vmatpush1.msra.mxu0 0.0
    %312 = vmatprep.subr.mxu0 0.0
    %313 = vmatpush1.msra.mxu0 0.0
    %314 = vmatprep.subr.mxu0 0.0
    %315 = vmatpush1.msra.mxu0 0.0
    %316 = vmatprep.subr.mxu0 0.0
    %317 = vmatpush1.msra.mxu0 0.0
    %318 = vmatprep.subr.mxu0 0.0
    %319 = vmatpush1.msra.mxu0 0.0
    %320 = vmatprep.subr.mxu0 0.0
    %321 = vmatpush1.msra.mxu0 0.0
    %322 = vmatprep.subr.mxu0 0.0
    %323 = vmatpush1.msra.mxu0 0.0
    %324 = vmatprep.subr.mxu0 0.0
    %325 = vmatpush1.msra.mxu0 0.0
    %326 = vmatprep.subr.mxu0 0.0
    %327 = vmatpush1.msra.mxu0 0.0
    %328 = vmatprep.mubr.f32.mxu0 0.0
    %329 = vmatmul.mubr.f32.gmra.mrb[0].mxu0 %v128
    %v330 = vpop.f32.mrb[0].mxu0
    %v331 = vadd.f32 0.0, %v330
    %v332 = vpop.f32.mrb[0].mxu0
    %v333 = vadd.f32 0.0, %v332
    %334 = vmatprep.mubr.f32.mxu0 0.0
    %335 = vmatmul.mubr.f32.gmra.mrb[0].mxu0 %v131
    %v336 = vpop.f32.mrb[0].mxu0
    %v337 = vadd.f32 0.0, %v336
    %v338 = vpop.f32.mrb[0].mxu0
    %v339 = vadd.f32 0.0, %v338
    %340 = vmatprep.mubr.f32.mxu0 0.0
    %341 = vmatmul.mubr.f32.gmra.mrb[0].mxu0 %v134
    %v342 = vpop.f32.mrb[0].mxu0
    %v343 = vadd.f32 0.0, %v342
    %v344 = vpop.f32.mrb[0].mxu0
    %v345 = vadd.f32 0.0, %v344
    %346 = vmatprep.mubr.f32.mxu0 0.0
    %347 = vmatmul.mubr.f32.gmra.mrb[0].mxu0 %v137
    %v348 = vpop.f32.mrb[0].mxu0
    %v349 = vadd.f32 0.0, %v348
    %v350 = vpop.f32.mrb[0].mxu0
    %v351 = vadd.f32 0.0, %v350
    %352 = vmatprep.mubr.f32.mxu0 0.0
    %353 = vmatmul.mubr.f32.gmra.mrb[0].mxu0 %v140
    %v354 = vpop.f32.mrb[0].mxu0
    %v355 = vadd.f32 0.0, %v354
    %v356 = vpop.f32.mrb[0].mxu0
    %v357 = vadd.f32 0.0, %v356
    %358 = vmatprep.mubr.f32.mxu0 0.0
    %359 = vmatmul.mubr.f32.gmra.mrb[0].mxu0 %v143
    %v360 = vpop.f32.mrb[0].mxu0
    %v361 = vadd.f32 0.0, %v360
    %v362 = vpop.f32.mrb[0].mxu0
    %v363 = vadd.f32 0.0, %v362
    %364 = vmatprep.mubr.f32.mxu0 0.0
    %365 = vmatmul.mubr.f32.gmra.mrb[0].mxu0 %v146
    %v366 = vpop.f32.mrb[0].mxu0
    %v367 = vadd.f32 0.0, %v366
    %v368 = vpop.f32.mrb[0].mxu0
    %v369 = vadd.f32 0.0, %v368
    %370 = vmatprep.mubr.f32.mxu0 0.0
    %371 = vmatmul.mubr.f32.gmra.mrb[0].mxu0 %v149
    %v372 = vpop.f32.mrb[0].mxu0
    %v373 = vadd.f32 0.0, %v372
    %v374 = vpop.f32.mrb[0].mxu0
    %v375 = vadd.f32 0.0, %v374
    %376 = vdwg.mxu0
    %377 = vmatprep.subr.mxu0 %v67
    %378 = vmatpush1.msra.mxu0 %v66
    %379 = vmatprep.subr.mxu0 %v75
    %380 = vmatpush1.msra.mxu0 %v74
    %381 = vmatprep.subr.mxu0 %v83
    %382 = vmatpush1.msra.mxu0 %v82
    %383 = vmatprep.subr.mxu0 %v91
    %384 = vmatpush1.msra.mxu0 %v90
    %385 = vmatprep.subr.mxu0 %v99
    %386 = vmatpush1.msra.mxu0 %v98
    %387 = vmatprep.subr.mxu0 %v107
    %388 = vmatpush1.msra.mxu0 %v106
    %389 = vmatprep.subr.mxu0 %v115
    %390 = vmatpush1.msra.mxu0 %v114
    %391 = vmatprep.subr.mxu0 %v123
    %392 = vmatpush1.msra.mxu0 %v122
    %393 = vmatprep.subr.mxu0 0.0
    %394 = vmatpush1.msra.mxu0 0.0
    %395 = vmatprep.subr.mxu0 0.0
    %396 = vmatpush1.msra.mxu0 0.0
    %397 = vmatprep.subr.mxu0 0.0
    %398 = vmatpush1.msra.mxu0 0.0
    %399 = vmatprep.subr.mxu0 0.0
    %400 = vmatpush1.msra.mxu0 0.0
    %401 = vmatprep.subr.mxu0 0.0
    %402 = vmatpush1.msra.mxu0 0.0
    %403 = vmatprep.subr.mxu0 0.0
    %404 = vmatpush1.msra.mxu0 0.0
    %405 = vmatprep.subr.mxu0 0.0
    %406 = vmatpush1.msra.mxu0 0.0
    %407 = vmatprep.subr.mxu0 0.0
    %408 = vmatpush1.msra.mxu0 0.0
    %409 = vmatprep.subr.mxu0 0.0
    %410 = vmatpush1.msra.mxu0 0.0
    %411 = vmatprep.subr.mxu0 0.0
    %412 = vmatpush1.msra.mxu0 0.0
    %413 = vmatprep.subr.mxu0 0.0
    %414 = vmatpush1.msra.mxu0 0.0
    %415 = vmatprep.subr.mxu0 0.0
    %416 = vmatpush1.msra.mxu0 0.0
    %417 = vmatprep.subr.mxu0 0.0
    %418 = vmatpush1.msra.mxu0 0.0
    %419 = vmatprep.subr.mxu0 0.0
    %420 = vmatpush1.msra.mxu0 0.0
    %421 = vmatprep.subr.mxu0 0.0
    %422 = vmatpush1.msra.mxu0 0.0
    %423 = vmatprep.subr.mxu0 0.0
    %424 = vmatpush1.msra.mxu0 0.0
    %425 = vmatprep.subr.mxu0 0.0
    %426 = vmatpush1.msra.mxu0 0.0
    %427 = vmatprep.subr.mxu0 0.0
    %428 = vmatpush1.msra.mxu0 0.0
    %429 = vmatprep.subr.mxu0 0.0
    %430 = vmatpush1.msra.mxu0 0.0
    %431 = vmatprep.subr.mxu0 0.0
    %432 = vmatpush1.msra.mxu0 0.0
    %433 = vmatprep.subr.mxu0 0.0
    %434 = vmatpush1.msra.mxu0 0.0
    %435 = vmatprep.subr.mxu0 0.0
    %436 = vmatpush1.msra.mxu0 0.0
    %437 = vmatprep.subr.mxu0 0.0
    %438 = vmatpush1.msra.mxu0 0.0
    %439 = vmatprep.subr.mxu0 0.0
    %440 = vmatpush1.msra.mxu0 0.0
    %441 = vmatprep.mubr.f32.mxu0 0.0
    %442 = vmatmul.mubr.f32.gmra.mrb[0].mxu0 %v128
    %v443 = vpop.f32.mrb[0].mxu0
    %v444 = vadd.f32 0.0, %v443
    %v445 = vpop.f32.mrb[0].mxu0
    %v446 = vadd.f32 0.0, %v445
    %447 = vmatprep.mubr.f32.mxu0 0.0
    %448 = vmatmul.mubr.f32.gmra.mrb[0].mxu0 %v131
    %v449 = vpop.f32.mrb[0].mxu0
    %v450 = vadd.f32 0.0, %v449
    %v451 = vpop.f32.mrb[0].mxu0
    %v452 = vadd.f32 0.0, %v451
    %453 = vmatprep.mubr.f32.mxu0 0.0
    %454 = vmatmul.mubr.f32.gmra.mrb[0].mxu0 %v134
    %v455 = vpop.f32.mrb[0].mxu0
    %v456 = vadd.f32 0.0, %v455
    %v457 = vpop.f32.mrb[0].mxu0
    %v458 = vadd.f32 0.0, %v457
    %459 = vmatprep.mubr.f32.mxu0 0.0
    %460 = vmatmul.mubr.f32.gmra.mrb[0].mxu0 %v137
    %v461 = vpop.f32.mrb[0].mxu0
    %v462 = vadd.f32 0.0, %v461
    %v463 = vpop.f32.mrb[0].mxu0
    %v464 = vadd.f32 0.0, %v463
    %465 = vmatprep.mubr.f32.mxu0 0.0
    %466 = vmatmul.mubr.f32.gmra.mrb[0].mxu0 %v140
    %v467 = vpop.f32.mrb[0].mxu0
    %v468 = vadd.f32 0.0, %v467
    %v469 = vpop.f32.mrb[0].mxu0
    %v470 = vadd.f32 0.0, %v469
    %471 = vmatprep.mubr.f32.mxu0 0.0
    %472 = vmatmul.mubr.f32.gmra.mrb[0].mxu0 %v143
    %v473 = vpop.f32.mrb[0].mxu0
    %v474 = vadd.f32 0.0, %v473
    %v475 = vpop.f32.mrb[0].mxu0
    %v476 = vadd.f32 0.0, %v475
    %477 = vmatprep.mubr.f32.mxu0 0.0
    %478 = vmatmul.mubr.f32.gmra.mrb[0].mxu0 %v146
    %v479 = vpop.f32.mrb[0].mxu0
    %v480 = vadd.f32 0.0, %v479
    %v481 = vpop.f32.mrb[0].mxu0
    %v482 = vadd.f32 0.0, %v481
    %483 = vmatprep.mubr.f32.mxu0 0.0
    %484 = vmatmul.mubr.f32.gmra.mrb[0].mxu0 %v149
    %v485 = vpop.f32.mrb[0].mxu0
    %v486 = vadd.f32 0.0, %v485
    %v487 = vpop.f32.mrb[0].mxu0
    %v488 = vadd.f32 0.0, %v487
    %489 = vdwg.mxu0
    %490 = vmatprep.subr.mxu0 %v69
    %491 = vmatpush1.msra.mxu0 %v68
    %492 = vmatprep.subr.mxu0 %v77
    %493 = vmatpush1.msra.mxu0 %v76
    %494 = vmatprep.subr.mxu0 %v85
    %495 = vmatpush1.msra.mxu0 %v84
    %496 = vmatprep.subr.mxu0 %v93
    %497 = vmatpush1.msra.mxu0 %v92
    %498 = vmatprep.subr.mxu0 %v101
    %499 = vmatpush1.msra.mxu0 %v100
    %500 = vmatprep.subr.mxu0 %v109
    %501 = vmatpush1.msra.mxu0 %v108
    %502 = vmatprep.subr.mxu0 %v117
    %503 = vmatpush1.msra.mxu0 %v116
    %504 = vmatprep.subr.mxu0 %v125
    %505 = vmatpush1.msra.mxu0 %v124
    %506 = vmatprep.subr.mxu0 0.0
    %507 = vmatpush1.msra.mxu0 0.0
    %508 = vmatprep.subr.mxu0 0.0
    %509 = vmatpush1.msra.mxu0 0.0
    %510 = vmatprep.subr.mxu0 0.0
    %511 = vmatpush1.msra.mxu0 0.0
    %512 = vmatprep.subr.mxu0 0.0
    %513 = vmatpush1.msra.mxu0 0.0
    %514 = vmatprep.subr.mxu0 0.0
    %515 = vmatpush1.msra.mxu0 0.0
    %516 = vmatprep.subr.mxu0 0.0
    %517 = vmatpush1.msra.mxu0 0.0
    %518 = vmatprep.subr.mxu0 0.0
    %519 = vmatpush1.msra.mxu0 0.0
    %520 = vmatprep.subr.mxu0 0.0
    %521 = vmatpush1.msra.mxu0 0.0
    %522 = vmatprep.subr.mxu0 0.0
    %523 = vmatpush1.msra.mxu0 0.0
    %524 = vmatprep.subr.mxu0 0.0
    %525 = vmatpush1.msra.mxu0 0.0
    %526 = vmatprep.subr.mxu0 0.0
    %527 = vmatpush1.msra.mxu0 0.0
    %528 = vmatprep.subr.mxu0 0.0
    %529 = vmatpush1.msra.mxu0 0.0
    %530 = vmatprep.subr.mxu0 0.0
    %531 = vmatpush1.msra.mxu0 0.0
    %532 = vmatprep.subr.mxu0 0.0
    %533 = vmatpush1.msra.mxu0 0.0
    %534 = vmatprep.subr.mxu0 0.0
    %535 = vmatpush1.msra.mxu0 0.0
    %536 = vmatprep.subr.mxu0 0.0
    %537 = vmatpush1.msra.mxu0 0.0
    %538 = vmatprep.subr.mxu0 0.0
    %539 = vmatpush1.msra.mxu0 0.0
    %540 = vmatprep.subr.mxu0 0.0
    %541 = vmatpush1.msra.mxu0 0.0
    %542 = vmatprep.subr.mxu0 0.0
    %543 = vmatpush1.msra.mxu0 0.0
    %544 = vmatprep.subr.mxu0 0.0
    %545 = vmatpush1.msra.mxu0 0.0
    %546 = vmatprep.subr.mxu0 0.0
    %547 = vmatpush1.msra.mxu0 0.0
    %548 = vmatprep.subr.mxu0 0.0
    %549 = vmatpush1.msra.mxu0 0.0
    %550 = vmatprep.subr.mxu0 0.0
    %551 = vmatpush1.msra.mxu0 0.0
    %552 = vmatprep.subr.mxu0 0.0
    %553 = vmatpush1.msra.mxu0 0.0
    %554 = vmatprep.mubr.f32.mxu0 0.0
    %555 = vmatmul.mubr.f32.gmra.mrb[0].mxu0 %v128
    %v556 = vpop.f32.mrb[0].mxu0
    %v557 = vadd.f32 0.0, %v556
    %v558 = vpop.f32.mrb[0].mxu0
    %v559 = vadd.f32 0.0, %v558
    %560 = vmatprep.mubr.f32.mxu0 0.0
    %561 = vmatmul.mubr.f32.gmra.mrb[0].mxu0 %v131
    %v562 = vpop.f32.mrb[0].mxu0
    %v563 = vadd.f32 0.0, %v562
    %v564 = vpop.f32.mrb[0].mxu0
    %v565 = vadd.f32 0.0, %v564
    %566 = vmatprep.mubr.f32.mxu0 0.0
    %567 = vmatmul.mubr.f32.gmra.mrb[0].mxu0 %v134
    %v568 = vpop.f32.mrb[0].mxu0
    %v569 = vadd.f32 0.0, %v568
    %v570 = vpop.f32.mrb[0].mxu0
    %v571 = vadd.f32 0.0, %v570
    %572 = vmatprep.mubr.f32.mxu0 0.0
    %573 = vmatmul.mubr.f32.gmra.mrb[0].mxu0 %v137
    %v574 = vpop.f32.mrb[0].mxu0
    %v575 = vadd.f32 0.0, %v574
    %v576 = vpop.f32.mrb[0].mxu0
    %v577 = vadd.f32 0.0, %v576
    %578 = vmatprep.mubr.f32.mxu0 0.0
    %579 = vmatmul.mubr.f32.gmra.mrb[0].mxu0 %v140
    %v580 = vpop.f32.mrb[0].mxu0
    %v581 = vadd.f32 0.0, %v580
    %v582 = vpop.f32.mrb[0].mxu0
    %v583 = vadd.f32 0.0, %v582
    %584 = vmatprep.mubr.f32.mxu0 0.0
    %585 = vmatmul.mubr.f32.gmra.mrb[0].mxu0 %v143
    %v586 = vpop.f32.mrb[0].mxu0
    %v587 = vadd.f32 0.0, %v586
    %v588 = vpop.f32.mrb[0].mxu0
    %v589 = vadd.f32 0.0, %v588
    %590 = vmatprep.mubr.f32.mxu0 0.0
    %591 = vmatmul.mubr.f32.gmra.mrb[0].mxu0 %v146
    %v592 = vpop.f32.mrb[0].mxu0
    %v593 = vadd.f32 0.0, %v592
    %v594 = vpop.f32.mrb[0].mxu0
    %v595 = vadd.f32 0.0, %v594
    %596 = vmatprep.mubr.f32.mxu0 0.0
    %597 = vmatmul.mubr.f32.gmra.mrb[0].mxu0 %v149
    %v598 = vpop.f32.mrb[0].mxu0
    %v599 = vadd.f32 0.0, %v598
    %v600 = vpop.f32.mrb[0].mxu0
    %v601 = vadd.f32 0.0, %v600
    %602 = vdwg.mxu0
    %v603 = vand.u32 2147483647, %v218
    %v604 = vand.u32 2147483647, %v220
    %v605 = vand.u32 2147483647, %v331
    %v606 = vand.u32 2147483647, %v333
    %v607 = vand.u32 2147483647, %v444
    %v608 = vand.u32 2147483647, %v446
    %v609 = vand.u32 2147483647, %v557
    %v610 = vand.u32 2147483647, %v559
    %v611 = vand.u32 2147483647, %v224
    %v612 = vand.u32 2147483647, %v226
    %v613 = vand.u32 2147483647, %v337
    %v614 = vand.u32 2147483647, %v339
    %v615 = vand.u32 2147483647, %v450
    %v616 = vand.u32 2147483647, %v452
    %v617 = vand.u32 2147483647, %v563
    %v618 = vand.u32 2147483647, %v565
    %v619 = vand.u32 2147483647, %v230
    %v620 = vand.u32 2147483647, %v232
    %v621 = vand.u32 2147483647, %v343
    %v622 = vand.u32 2147483647, %v345
    %v623 = vand.u32 2147483647, %v456
    %v624 = vand.u32 2147483647, %v458
    %v625 = vand.u32 2147483647, %v569
    %v626 = vand.u32 2147483647, %v571
    %v627 = vand.u32 2147483647, %v236
    %v628 = vand.u32 2147483647, %v238
    %v629 = vand.u32 2147483647, %v349
    %v630 = vand.u32 2147483647, %v351
    %v631 = vand.u32 2147483647, %v462
    %v632 = vand.u32 2147483647, %v464
    %v633 = vand.u32 2147483647, %v575
    %v634 = vand.u32 2147483647, %v577
    %v635 = vand.u32 2147483647, %v242
    %v636 = vand.u32 2147483647, %v244
    %v637 = vand.u32 2147483647, %v355
    %v638 = vand.u32 2147483647, %v357
    %v639 = vand.u32 2147483647, %v468
    %v640 = vand.u32 2147483647, %v470
    %v641 = vand.u32 2147483647, %v581
    %v642 = vand.u32 2147483647, %v583
    %v643 = vand.u32 2147483647, %v248
    %v644 = vand.u32 2147483647, %v250
    %v645 = vand.u32 2147483647, %v361
    %v646 = vand.u32 2147483647, %v363
    %v647 = vand.u32 2147483647, %v474
    %v648 = vand.u32 2147483647, %v476
    %v649 = vand.u32 2147483647, %v587
    %v650 = vand.u32 2147483647, %v589
    %v651 = vand.u32 2147483647, %v254
    %v652 = vand.u32 2147483647, %v256
    %v653 = vand.u32 2147483647, %v367
    %v654 = vand.u32 2147483647, %v369
    %v655 = vand.u32 2147483647, %v480
    %v656 = vand.u32 2147483647, %v482
    %v657 = vand.u32 2147483647, %v593
    %v658 = vand.u32 2147483647, %v595
    %v659 = vand.u32 2147483647, %v260
    %v660 = vand.u32 2147483647, %v262
    %v661 = vand.u32 2147483647, %v373
    %v662 = vand.u32 2147483647, %v375
    %v663 = vand.u32 2147483647, %v486
    %v664 = vand.u32 2147483647, %v488
    %v665 = vand.u32 2147483647, %v599
    %v666 = vand.u32 2147483647, %v601
    %v667 = vadd.f32 %v603, 1e-15
    %v668 = vadd.f32 %v604, 1e-15
    %v669 = vadd.f32 %v605, 1e-15
    %v670 = vadd.f32 %v606, 1e-15
    %v671 = vadd.f32 %v607, 1e-15
    %v672 = vadd.f32 %v608, 1e-15
    %v673 = vadd.f32 %v609, 1e-15
    %v674 = vadd.f32 %v610, 1e-15
    %v675 = vadd.f32 %v611, 1e-15
    %v676 = vadd.f32 %v612, 1e-15
    %v677 = vadd.f32 %v613, 1e-15
    %v678 = vadd.f32 %v614, 1e-15
    %v679 = vadd.f32 %v615, 1e-15
    %v680 = vadd.f32 %v616, 1e-15
    %v681 = vadd.f32 %v617, 1e-15
    %v682 = vadd.f32 %v618, 1e-15
    %v683 = vadd.f32 %v619, 1e-15
    %v684 = vadd.f32 %v620, 1e-15
    %v685 = vadd.f32 %v621, 1e-15
    %v686 = vadd.f32 %v622, 1e-15
    %v687 = vadd.f32 %v623, 1e-15
    %v688 = vadd.f32 %v624, 1e-15
    %v689 = vadd.f32 %v625, 1e-15
    %v690 = vadd.f32 %v626, 1e-15
    %v691 = vadd.f32 %v627, 1e-15
    %v692 = vadd.f32 %v628, 1e-15
    %v693 = vadd.f32 %v629, 1e-15
    %v694 = vadd.f32 %v630, 1e-15
    %v695 = vadd.f32 %v631, 1e-15
    %v696 = vadd.f32 %v632, 1e-15
    %v697 = vadd.f32 %v633, 1e-15
    %v698 = vadd.f32 %v634, 1e-15
    %v699 = vadd.f32 %v635, 1e-15
    %v700 = vadd.f32 %v636, 1e-15
    %v701 = vadd.f32 %v637, 1e-15
    %v702 = vadd.f32 %v638, 1e-15
    %v703 = vadd.f32 %v639, 1e-15
    %v704 = vadd.f32 %v640, 1e-15
    %v705 = vadd.f32 %v641, 1e-15
    %v706 = vadd.f32 %v642, 1e-15
    %v707 = vadd.f32 %v643, 1e-15
    %v708 = vadd.f32 %v644, 1e-15
    %v709 = vadd.f32 %v645, 1e-15
    %v710 = vadd.f32 %v646, 1e-15
    %v711 = vadd.f32 %v647, 1e-15
    %v712 = vadd.f32 %v648, 1e-15
    %v713 = vadd.f32 %v649, 1e-15
    %v714 = vadd.f32 %v650, 1e-15
    %v715 = vadd.f32 %v651, 1e-15
    %v716 = vadd.f32 %v652, 1e-15
    %v717 = vadd.f32 %v653, 1e-15
    %v718 = vadd.f32 %v654, 1e-15
    %v719 = vadd.f32 %v655, 1e-15
    %v720 = vadd.f32 %v656, 1e-15
    %v721 = vadd.f32 %v657, 1e-15
    %v722 = vadd.f32 %v658, 1e-15
    %v723 = vadd.f32 %v659, 1e-15
    %v724 = vadd.f32 %v660, 1e-15
    %v725 = vadd.f32 %v661, 1e-15
    %v726 = vadd.f32 %v662, 1e-15
    %v727 = vadd.f32 %v663, 1e-15
    %v728 = vadd.f32 %v664, 1e-15
    %v729 = vadd.f32 %v665, 1e-15
    %v730 = vadd.f32 %v666, 1e-15
    %v731 = vlog2.pop %v667
    %v732 = vmul.f32 %v731, 0.6931472
    %v733 = vlog2.pop %v668
    %v734 = vmul.f32 %v733, 0.6931472
    %v735 = vlog2.pop %v669
    %v736 = vmul.f32 %v735, 0.6931472
    %v737 = vlog2.pop %v670
    %v738 = vmul.f32 %v737, 0.6931472
    %v739 = vlog2.pop %v671
    %v740 = vmul.f32 %v739, 0.6931472
    %v741 = vlog2.pop %v672
    %v742 = vmul.f32 %v741, 0.6931472
    %v743 = vlog2.pop %v673
    %v744 = vmul.f32 %v743, 0.6931472
    %v745 = vlog2.pop %v674
    %v746 = vmul.f32 %v745, 0.6931472
    %v747 = vlog2.pop %v675
    %v748 = vmul.f32 %v747, 0.6931472
    %v749 = vlog2.pop %v676
    %v750 = vmul.f32 %v749, 0.6931472
    %v751 = vlog2.pop %v677
    %v752 = vmul.f32 %v751, 0.6931472
    %v753 = vlog2.pop %v678
    %v754 = vmul.f32 %v753, 0.6931472
    %v755 = vlog2.pop %v679
    %v756 = vmul.f32 %v755, 0.6931472
    %v757 = vlog2.pop %v680
    %v758 = vmul.f32 %v757, 0.6931472
    %v759 = vlog2.pop %v681
    %v760 = vmul.f32 %v759, 0.6931472
    %v761 = vlog2.pop %v682
    %v762 = vmul.f32 %v761, 0.6931472
    %v763 = vlog2.pop %v683
    %v764 = vmul.f32 %v763, 0.6931472
    %v765 = vlog2.pop %v684
    %v766 = vmul.f32 %v765, 0.6931472
    %v767 = vlog2.pop %v685
    %v768 = vmul.f32 %v767, 0.6931472
    %v769 = vlog2.pop %v686
    %v770 = vmul.f32 %v769, 0.6931472
    %v771 = vlog2.pop %v687
    %v772 = vmul.f32 %v771, 0.6931472
    %v773 = vlog2.pop %v688
    %v774 = vmul.f32 %v773, 0.6931472
    %v775 = vlog2.pop %v689
    %v776 = vmul.f32 %v775, 0.6931472
    %v777 = vlog2.pop %v690
    %v778 = vmul.f32 %v777, 0.6931472
    %v779 = vlog2.pop %v691
    %v780 = vmul.f32 %v779, 0.6931472
    %v781 = vlog2.pop %v692
    %v782 = vmul.f32 %v781, 0.6931472
    %v783 = vlog2.pop %v693
    %v784 = vmul.f32 %v783, 0.6931472
    %v785 = vlog2.pop %v694
    %v786 = vmul.f32 %v785, 0.6931472
    %v787 = vlog2.pop %v695
    %v788 = vmul.f32 %v787, 0.6931472
    %v789 = vlog2.pop %v696
    %v790 = vmul.f32 %v789, 0.6931472
    %v791 = vlog2.pop %v697
    %v792 = vmul.f32 %v791, 0.6931472
    %v793 = vlog2.pop %v698
    %v794 = vmul.f32 %v793, 0.6931472
    %v795 = vlog2.pop %v699
    %v796 = vmul.f32 %v795, 0.6931472
    %v797 = vlog2.pop %v700
    %v798 = vmul.f32 %v797, 0.6931472
    %v799 = vlog2.pop %v701
    %v800 = vmul.f32 %v799, 0.6931472
    %v801 = vlog2.pop %v702
    %v802 = vmul.f32 %v801, 0.6931472
    %v803 = vlog2.pop %v703
    %v804 = vmul.f32 %v803, 0.6931472
    %v805 = vlog2.pop %v704
    %v806 = vmul.f32 %v805, 0.6931472
    %v807 = vlog2.pop %v705
    %v808 = vmul.f32 %v807, 0.6931472
    %v809 = vlog2.pop %v706
    %v810 = vmul.f32 %v809, 0.6931472
    %v811 = vlog2.pop %v707
    %v812 = vmul.f32 %v811, 0.6931472
    %v813 = vlog2.pop %v708
    %v814 = vmul.f32 %v813, 0.6931472
    %v815 = vlog2.pop %v709
    %v816 = vmul.f32 %v815, 0.6931472
    %v817 = vlog2.pop %v710
    %v818 = vmul.f32 %v817, 0.6931472
    %v819 = vlog2.pop %v711
    %v820 = vmul.f32 %v819, 0.6931472
    %v821 = vlog2.pop %v712
    %v822 = vmul.f32 %v821, 0.6931472
    %v823 = vlog2.pop %v713
    %v824 = vmul.f32 %v823, 0.6931472
    %v825 = vlog2.pop %v714
    %v826 = vmul.f32 %v825, 0.6931472
    %v827 = vlog2.pop %v715
    %v828 = vmul.f32 %v827, 0.6931472
    %v829 = vlog2.pop %v716
    %v830 = vmul.f32 %v829, 0.6931472
    %v831 = vlog2.pop %v717
    %v832 = vmul.f32 %v831, 0.6931472
    %v833 = vlog2.pop %v718
    %v834 = vmul.f32 %v833, 0.6931472
    %v835 = vlog2.pop %v719
    %v836 = vmul.f32 %v835, 0.6931472
    %v837 = vlog2.pop %v720
    %v838 = vmul.f32 %v837, 0.6931472
    %v839 = vlog2.pop %v721
    %v840 = vmul.f32 %v839, 0.6931472
    %v841 = vlog2.pop %v722
    %v842 = vmul.f32 %v841, 0.6931472
    %v843 = vlog2.pop %v723
    %v844 = vmul.f32 %v843, 0.6931472
    %v845 = vlog2.pop %v724
    %v846 = vmul.f32 %v845, 0.6931472
    %v847 = vlog2.pop %v725
    %v848 = vmul.f32 %v847, 0.6931472
    %v849 = vlog2.pop %v726
    %v850 = vmul.f32 %v849, 0.6931472
    %v851 = vlog2.pop %v727
    %v852 = vmul.f32 %v851, 0.6931472
    %v853 = vlog2.pop %v728
    %v854 = vmul.f32 %v853, 0.6931472
    %v855 = vlog2.pop %v729
    %v856 = vmul.f32 %v855, 0.6931472
    %v857 = vlog2.pop %v730
    %v858 = vmul.f32 %v857, 0.6931472
    %v859 = vmul.f32 %v732, 0.4342945
    %v860 = vmul.f32 %v734, 0.4342945
    %v861 = vmul.f32 %v736, 0.4342945
    %v862 = vmul.f32 %v738, 0.4342945
    %v863 = vmul.f32 %v740, 0.4342945
    %v864 = vmul.f32 %v742, 0.4342945
    %v865 = vmul.f32 %v744, 0.4342945
    %v866 = vmul.f32 %v746, 0.4342945
    %v867 = vmul.f32 %v748, 0.4342945
    %v868 = vmul.f32 %v750, 0.4342945
    %v869 = vmul.f32 %v752, 0.4342945
    %v870 = vmul.f32 %v754, 0.4342945
    %v871 = vmul.f32 %v756, 0.4342945
    %v872 = vmul.f32 %v758, 0.4342945
    %v873 = vmul.f32 %v760, 0.4342945
    %v874 = vmul.f32 %v762, 0.4342945
    %v875 = vmul.f32 %v764, 0.4342945
    %v876 = vmul.f32 %v766, 0.4342945
    %v877 = vmul.f32 %v768, 0.4342945
    %v878 = vmul.f32 %v770, 0.4342945
    %v879 = vmul.f32 %v772, 0.4342945
    %v880 = vmul.f32 %v774, 0.4342945
    %v881 = vmul.f32 %v776, 0.4342945
    %v882 = vmul.f32 %v778, 0.4342945
    %v883 = vmul.f32 %v780, 0.4342945
    %v884 = vmul.f32 %v782, 0.4342945
    %v885 = vmul.f32 %v784, 0.4342945
    %v886 = vmul.f32 %v786, 0.4342945
    %v887 = vmul.f32 %v788, 0.4342945
    %v888 = vmul.f32 %v790, 0.4342945
    %v889 = vmul.f32 %v792, 0.4342945
    %v890 = vmul.f32 %v794, 0.4342945
    %v891 = vmul.f32 %v796, 0.4342945
    %v892 = vmul.f32 %v798, 0.4342945
    %v893 = vmul.f32 %v800, 0.4342945
    %v894 = vmul.f32 %v802, 0.4342945
    %v895 = vmul.f32 %v804, 0.4342945
    %v896 = vmul.f32 %v806, 0.4342945
    %v897 = vmul.f32 %v808, 0.4342945
    %v898 = vmul.f32 %v810, 0.4342945
    %v899 = vmul.f32 %v812, 0.4342945
    %v900 = vmul.f32 %v814, 0.4342945
    %v901 = vmul.f32 %v816, 0.4342945
    %v902 = vmul.f32 %v818, 0.4342945
    %v903 = vmul.f32 %v820, 0.4342945
    %v904 = vmul.f32 %v822, 0.4342945
    %v905 = vmul.f32 %v824, 0.4342945
    %v906 = vmul.f32 %v826, 0.4342945
    %v907 = vmul.f32 %v828, 0.4342945
    %v908 = vmul.f32 %v830, 0.4342945
    %v909 = vmul.f32 %v832, 0.4342945
    %v910 = vmul.f32 %v834, 0.4342945
    %v911 = vmul.f32 %v836, 0.4342945
    %v912 = vmul.f32 %v838, 0.4342945
    %v913 = vmul.f32 %v840, 0.4342945
    %v914 = vmul.f32 %v842, 0.4342945
    %v915 = vmul.f32 %v844, 0.4342945
    %v916 = vmul.f32 %v846, 0.4342945
    %v917 = vmul.f32 %v848, 0.4342945
    %v918 = vmul.f32 %v850, 0.4342945
    %v919 = vmul.f32 %v852, 0.4342945
    %v920 = vmul.f32 %v854, 0.4342945
    %v921 = vmul.f32 %v856, 0.4342945
    %v922 = vmul.f32 %v858, 0.4342945
    %v923 = vld [vmem:[#allocation7] sm:$0xff]
    %v925 = vsel %vm126, %v923, 0
    %927 = vmatprep.subr.mxu0 %v860
    %928 = vmatpush1.msra.mxu0 %v859
    %929 = vmatprep.subr.mxu0 %v868
    %930 = vmatpush1.msra.mxu0 %v867
    %931 = vmatprep.subr.mxu0 %v876
    %932 = vmatpush1.msra.mxu0 %v875
    %933 = vmatprep.subr.mxu0 %v884
    %934 = vmatpush1.msra.mxu0 %v883
    %935 = vmatprep.subr.mxu0 %v892
    %936 = vmatpush1.msra.mxu0 %v891
    %937 = vmatprep.subr.mxu0 %v900
    %938 = vmatpush1.msra.mxu0 %v899
    %939 = vmatprep.subr.mxu0 %v908
    %940 = vmatpush1.msra.mxu0 %v907
    %941 = vmatprep.subr.mxu0 %v916
    %942 = vmatpush1.msra.mxu0 %v915
    %943 = vmatprep.subr.mxu0 0.0
    %944 = vmatpush1.msra.mxu0 0.0
    %945 = vmatprep.subr.mxu0 0.0
    %946 = vmatpush1.msra.mxu0 0.0
    %947 = vmatprep.subr.mxu0 0.0
    %948 = vmatpush1.msra.mxu0 0.0
    %949 = vmatprep.subr.mxu0 0.0
    %950 = vmatpush1.msra.mxu0 0.0
    %951 = vmatprep.subr.mxu0 0.0
    %952 = vmatpush1.msra.mxu0 0.0
    %953 = vmatprep.subr.mxu0 0.0
    %954 = vmatpush1.msra.mxu0 0.0
    %955 = vmatprep.subr.mxu0 0.0
    %956 = vmatpush1.msra.mxu0 0.0
    %957 = vmatprep.subr.mxu0 0.0
    %958 = vmatpush1.msra.mxu0 0.0
    %959 = vmatprep.subr.mxu0 0.0
    %960 = vmatpush1.msra.mxu0 0.0
    %961 = vmatprep.subr.mxu0 0.0
    %962 = vmatpush1.msra.mxu0 0.0
    %963 = vmatprep.subr.mxu0 0.0
    %964 = vmatpush1.msra.mxu0 0.0
    %965 = vmatprep.subr.mxu0 0.0
    %966 = vmatpush1.msra.mxu0 0.0
    %967 = vmatprep.subr.mxu0 0.0
    %968 = vmatpush1.msra.mxu0 0.0
    %969 = vmatprep.subr.mxu0 0.0
    %970 = vmatpush1.msra.mxu0 0.0
    %971 = vmatprep.subr.mxu0 0.0
    %972 = vmatpush1.msra.mxu0 0.0
    %973 = vmatprep.subr.mxu0 0.0
    %974 = vmatpush1.msra.mxu0 0.0
    %975 = vmatprep.subr.mxu0 0.0
    %976 = vmatpush1.msra.mxu0 0.0
    %977 = vmatprep.subr.mxu0 0.0
    %978 = vmatpush1.msra.mxu0 0.0
    %979 = vmatprep.subr.mxu0 0.0
    %980 = vmatpush1.msra.mxu0 0.0
    %981 = vmatprep.subr.mxu0 0.0
    %982 = vmatpush1.msra.mxu0 0.0
    %983 = vmatprep.subr.mxu0 0.0
    %984 = vmatpush1.msra.mxu0 0.0
    %985 = vmatprep.subr.mxu0 0.0
    %986 = vmatpush1.msra.mxu0 0.0
    %987 = vmatprep.subr.mxu0 0.0
    %988 = vmatpush1.msra.mxu0 0.0
    %989 = vmatprep.subr.mxu0 0.0
    %990 = vmatpush1.msra.mxu0 0.0
    %991 = vmatprep.mubr.f32.mxu0 0.0
    %992 = vmatmul.mubr.f32.gmra.mrb[0].mxu0 %v925
    %v993 = vpop.f32.mrb[0].mxu0
    %v994 = vadd.f32 0.0, %v993
    %v995 = vpop.f32.mrb[0].mxu0
    %v996 = vadd.f32 0.0, %v995
    %997 = vdwg.mxu0
    %998 = vmatprep.subr.mxu0 %v862
    %999 = vmatpush1.msra.mxu0 %v861
    %1000 = vmatprep.subr.mxu0 %v870
    %1001 = vmatpush1.msra.mxu0 %v869
    %1002 = vmatprep.subr.mxu0 %v878
    %1003 = vmatpush1.msra.mxu0 %v877
    %1004 = vmatprep.subr.mxu0 %v886
    %1005 = vmatpush1.msra.mxu0 %v885
    %1006 = vmatprep.subr.mxu0 %v894
    %1007 = vmatpush1.msra.mxu0 %v893
    %1008 = vmatprep.subr.mxu0 %v902
    %1009 = vmatpush1.msra.mxu0 %v901
    %1010 = vmatprep.subr.mxu0 %v910
    %1011 = vmatpush1.msra.mxu0 %v909
    %1012 = vmatprep.subr.mxu0 %v918
    %1013 = vmatpush1.msra.mxu0 %v917
    %1014 = vmatprep.subr.mxu0 0.0
    %1015 = vmatpush1.msra.mxu0 0.0
    %1016 = vmatprep.subr.mxu0 0.0
    %1017 = vmatpush1.msra.mxu0 0.0
    %1018 = vmatprep.subr.mxu0 0.0
    %1019 = vmatpush1.msra.mxu0 0.0
    %1020 = vmatprep.subr.mxu0 0.0
    %1021 = vmatpush1.msra.mxu0 0.0
    %1022 = vmatprep.subr.mxu0 0.0
    %1023 = vmatpush1.msra.mxu0 0.0
    %1024 = vmatprep.subr.mxu0 0.0
    %1025 = vmatpush1.msra.mxu0 0.0
    %1026 = vmatprep.subr.mxu0 0.0
    %1027 = vmatpush1.msra.mxu0 0.0
    %1028 = vmatprep.subr.mxu0 0.0
    %1029 = vmatpush1.msra.mxu0 0.0
    %1030 = vmatprep.subr.mxu0 0.0
    %1031 = vmatpush1.msra.mxu0 0.0
    %1032 = vmatprep.subr.mxu0 0.0
    %1033 = vmatpush1.msra.mxu0 0.0
    %1034 = vmatprep.subr.mxu0 0.0
    %1035 = vmatpush1.msra.mxu0 0.0
    %1036 = vmatprep.subr.mxu0 0.0
    %1037 = vmatpush1.msra.mxu0 0.0
    %1038 = vmatprep.subr.mxu0 0.0
    %1039 = vmatpush1.msra.mxu0 0.0
    %1040 = vmatprep.subr.mxu0 0.0
    %1041 = vmatpush1.msra.mxu0 0.0
    %1042 = vmatprep.subr.mxu0 0.0
    %1043 = vmatpush1.msra.mxu0 0.0
    %1044 = vmatprep.subr.mxu0 0.0
    %1045 = vmatpush1.msra.mxu0 0.0
    %1046 = vmatprep.subr.mxu0 0.0
    %1047 = vmatpush1.msra.mxu0 0.0
    %1048 = vmatprep.subr.mxu0 0.0
    %1049 = vmatpush1.msra.mxu0 0.0
    %1050 = vmatprep.subr.mxu0 0.0
    %1051 = vmatpush1.msra.mxu0 0.0
    %1052 = vmatprep.subr.mxu0 0.0
    %1053 = vmatpush1.msra.mxu0 0.0
    %1054 = vmatprep.subr.mxu0 0.0
    %1055 = vmatpush1.msra.mxu0 0.0
    %1056 = vmatprep.subr.mxu0 0.0
    %1057 = vmatpush1.msra.mxu0 0.0
    %1058 = vmatprep.subr.mxu0 0.0
    %1059 = vmatpush1.msra.mxu0 0.0
    %1060 = vmatprep.subr.mxu0 0.0
    %1061 = vmatpush1.msra.mxu0 0.0
    %1062 = vmatprep.mubr.f32.mxu0 0.0
    %1063 = vmatmul.mubr.f32.gmra.mrb[0].mxu0 %v925
    %v1064 = vpop.f32.mrb[0].mxu0
    %v1065 = vadd.f32 0.0, %v1064
    %v1066 = vpop.f32.mrb[0].mxu0
    %v1067 = vadd.f32 0.0, %v1066
    %1068 = vdwg.mxu0
    %1069 = vmatprep.subr.mxu0 %v864
    %1070 = vmatpush1.msra.mxu0 %v863
    %1071 = vmatprep.subr.mxu0 %v872
    %1072 = vmatpush1.msra.mxu0 %v871
    %1073 = vmatprep.subr.mxu0 %v880
    %1074 = vmatpush1.msra.mxu0 %v879
    %1075 = vmatprep.subr.mxu0 %v888
    %1076 = vmatpush1.msra.mxu0 %v887
    %1077 = vmatprep.subr.mxu0 %v896
    %1078 = vmatpush1.msra.mxu0 %v895
    %1079 = vmatprep.subr.mxu0 %v904
    %1080 = vmatpush1.msra.mxu0 %v903
    %1081 = vmatprep.subr.mxu0 %v912
    %1082 = vmatpush1.msra.mxu0 %v911
    %1083 = vmatprep.subr.mxu0 %v920
    %1084 = vmatpush1.msra.mxu0 %v919
    %1085 = vmatprep.subr.mxu0 0.0
    %1086 = vmatpush1.msra.mxu0 0.0
    %1087 = vmatprep.subr.mxu0 0.0
    %1088 = vmatpush1.msra.mxu0 0.0
    %1089 = vmatprep.subr.mxu0 0.0
    %1090 = vmatpush1.msra.mxu0 0.0
    %1091 = vmatprep.subr.mxu0 0.0
    %1092 = vmatpush1.msra.mxu0 0.0
    %1093 = vmatprep.subr.mxu0 0.0
    %1094 = vmatpush1.msra.mxu0 0.0
    %1095 = vmatprep.subr.mxu0 0.0
    %1096 = vmatpush1.msra.mxu0 0.0
    %1097 = vmatprep.subr.mxu0 0.0
    %1098 = vmatpush1.msra.mxu0 0.0
    %1099 = vmatprep.subr.mxu0 0.0
    %1100 = vmatpush1.msra.mxu0 0.0
    %1101 = vmatprep.subr.mxu0 0.0
    %1102 = vmatpush1.msra.mxu0 0.0
    %1103 = vmatprep.subr.mxu0 0.0
    %1104 = vmatpush1.msra.mxu0 0.0
    %1105 = vmatprep.subr.mxu0 0.0
    %1106 = vmatpush1.msra.mxu0 0.0
    %1107 = vmatprep.subr.mxu0 0.0
    %1108 = vmatpush1.msra.mxu0 0.0
    %1109 = vmatprep.subr.mxu0 0.0
    %1110 = vmatpush1.msra.mxu0 0.0
    %1111 = vmatprep.subr.mxu0 0.0
    %1112 = vmatpush1.msra.mxu0 0.0
    %1113 = vmatprep.subr.mxu0 0.0
    %1114 = vmatpush1.msra.mxu0 0.0
    %1115 = vmatprep.subr.mxu0 0.0
    %1116 = vmatpush1.msra.mxu0 0.0
    %1117 = vmatprep.subr.mxu0 0.0
    %1118 = vmatpush1.msra.mxu0 0.0
    %1119 = vmatprep.subr.mxu0 0.0
    %1120 = vmatpush1.msra.mxu0 0.0
    %1121 = vmatprep.subr.mxu0 0.0
    %1122 = vmatpush1.msra.mxu0 0.0
    %1123 = vmatprep.subr.mxu0 0.0
    %1124 = vmatpush1.msra.mxu0 0.0
    %1125 = vmatprep.subr.mxu0 0.0
    %1126 = vmatpush1.msra.mxu0 0.0
    %1127 = vmatprep.subr.mxu0 0.0
    %1128 = vmatpush1.msra.mxu0 0.0
    %1129 = vmatprep.subr.mxu0 0.0
    %1130 = vmatpush1.msra.mxu0 0.0
    %1131 = vmatprep.subr.mxu0 0.0
    %1132 = vmatpush1.msra.mxu0 0.0
    %1133 = vmatprep.mubr.f32.mxu0 0.0
    %1134 = vmatmul.mubr.f32.gmra.mrb[0].mxu0 %v925
    %v1135 = vpop.f32.mrb[0].mxu0
    %v1136 = vadd.f32 0.0, %v1135
    %v1137 = vpop.f32.mrb[0].mxu0
    %v1138 = vadd.f32 0.0, %v1137
    %1139 = vdwg.mxu0
    %1140 = vmatprep.subr.mxu0 %v866
    %1141 = vmatpush1.msra.mxu0 %v865
    %1142 = vmatprep.subr.mxu0 %v874
    %1143 = vmatpush1.msra.mxu0 %v873
    %1144 = vmatprep.subr.mxu0 %v882
    %1145 = vmatpush1.msra.mxu0 %v881
    %1146 = vmatprep.subr.mxu0 %v890
    %1147 = vmatpush1.msra.mxu0 %v889
    %1148 = vmatprep.subr.mxu0 %v898
    %1149 = vmatpush1.msra.mxu0 %v897
    %1150 = vmatprep.subr.mxu0 %v906
    %1151 = vmatpush1.msra.mxu0 %v905
    %1152 = vmatprep.subr.mxu0 %v914
    %1153 = vmatpush1.msra.mxu0 %v913
    %1154 = vmatprep.subr.mxu0 %v922
    %1155 = vmatpush1.msra.mxu0 %v921
    %1156 = vmatprep.subr.mxu0 0.0
    %1157 = vmatpush1.msra.mxu0 0.0
    %1158 = vmatprep.subr.mxu0 0.0
    %1159 = vmatpush1.msra.mxu0 0.0
    %1160 = vmatprep.subr.mxu0 0.0
    %1161 = vmatpush1.msra.mxu0 0.0
    %1162 = vmatprep.subr.mxu0 0.0
    %1163 = vmatpush1.msra.mxu0 0.0
    %1164 = vmatprep.subr.mxu0 0.0
    %1165 = vmatpush1.msra.mxu0 0.0
    %1166 = vmatprep.subr.mxu0 0.0
    %1167 = vmatpush1.msra.mxu0 0.0
    %1168 = vmatprep.subr.mxu0 0.0
    %1169 = vmatpush1.msra.mxu0 0.0
    %1170 = vmatprep.subr.mxu0 0.0
    %1171 = vmatpush1.msra.mxu0 0.0
    %1172 = vmatprep.subr.mxu0 0.0
    %1173 = vmatpush1.msra.mxu0 0.0
    %1174 = vmatprep.subr.mxu0 0.0
    %1175 = vmatpush1.msra.mxu0 0.0
    %1176 = vmatprep.subr.mxu0 0.0
    %1177 = vmatpush1.msra.mxu0 0.0
    %1178 = vmatprep.subr.mxu0 0.0
    %1179 = vmatpush1.msra.mxu0 0.0
    %1180 = vmatprep.subr.mxu0 0.0
    %1181 = vmatpush1.msra.mxu0 0.0
    %1182 = vmatprep.subr.mxu0 0.0
    %1183 = vmatpush1.msra.mxu0 0.0
    %1184 = vmatprep.subr.mxu0 0.0
    %1185 = vmatpush1.msra.mxu0 0.0
    %1186 = vmatprep.subr.mxu0 0.0
    %1187 = vmatpush1.msra.mxu0 0.0
    %1188 = vmatprep.subr.mxu0 0.0
    %1189 = vmatpush1.msra.mxu0 0.0
    %1190 = vmatprep.subr.mxu0 0.0
    %1191 = vmatpush1.msra.mxu0 0.0
    %1192 = vmatprep.subr.mxu0 0.0
    %1193 = vmatpush1.msra.mxu0 0.0
    %1194 = vmatprep.subr.mxu0 0.0
    %1195 = vmatpush1.msra.mxu0 0.0
    %1196 = vmatprep.subr.mxu0 0.0
    %1197 = vmatpush1.msra.mxu0 0.0
    %1198 = vmatprep.subr.mxu0 0.0
    %1199 = vmatpush1.msra.mxu0 0.0
    %1200 = vmatprep.subr.mxu0 0.0
    %1201 = vmatpush1.msra.mxu0 0.0
    %1202 = vmatprep.subr.mxu0 0.0
    %1203 = vmatpush1.msra.mxu0 0.0
    %1204 = vmatprep.mubr.f32.mxu0 0.0
    %1205 = vmatmul.mubr.f32.gmra.mrb[0].mxu0 %v925
    %v1206 = vpop.f32.mrb[0].mxu0
    %v1207 = vadd.f32 0.0, %v1206
    %v1208 = vpop.f32.mrb[0].mxu0
    %v1209 = vadd.f32 0.0, %v1208
    %1210 = vdwg.mxu0
    %1211 = vst [vmem:[#allocation8] sm:$0xff] %v994
    %1212 = vst [vmem:[#allocation8 + $0x8] sm:$0xff] %v996
    %1213 = vst [vmem:[#allocation8 + $0x10] sm:$0xff] %v1065
    %1214 = vst [vmem:[#allocation8 + $0x18] sm:$0xff] %v1067
    %1215 = vst [vmem:[#allocation8 + $0x20] sm:$0xff] %v1136
    %1216 = vst [vmem:[#allocation8 + $0x28] sm:$0xff] %v1138
    %1217 = vst [vmem:[#allocation8 + $0x30] sm:$0xff] %v1207
    %1218 = vst [vmem:[#allocation8 + $0x38] sm:$0xff] %v1209
    // Predicated region
    $region26: #{tpu_custom_call.1} parent=1 // pred_check
      _
    $region27: #{tpu_custom_call.1} parent=1 // pred_check_branch
      %1220 = sbr.rel (0) target = $region29
    $region28: #{tpu_custom_call.1} parent=1 // pred_region
      %s1222 = ssub.s32 1024, 1024
      %1223 = vsyncadd [#allocation4], %s1222
      %s1225 = sshll.u32 [#allocation8], 4
      %s1226 = int_to_ptr.vmem [resolvable:$true] %s1225
      %1228 = dma.vmem_to_hbm [thread:$0]  %s1226, 1024, %s3, [#allocation4]
    $region29: #{tpu_custom_call.1} parent=1 // pred_fallthru
      _
    // Predicated region
    $region30: #{tpu_custom_call.1} parent=1 // pred_check
      _
    $region31: #{tpu_custom_call.1} parent=1 // pred_check_branch
      %1230 = sbr.rel (0) target = $region33
    $region32: #{tpu_custom_call.1} parent=1 // pred_region
      %1231 = dma.done [#allocation4], 1024
    $region33: #{tpu_custom_call.1} parent=1 // pred_fallthru
      _
    %1232 = vsyncpa [#allocation3], 1
    %1233 = vsyncpa [#allocation6], 1
    %1234 = vsyncpa [#allocation4], 1

</llo_original>
